<compile_context>
chip_gen: v5e
topology: v5e:2x2
jax: 0.10.0
libtpu: 0.0.40
codegen_flags: <defaults>
</compile_context>

<pallas_src>
import math

import jax
import jax.numpy as jnp
from jax.experimental import pallas as pl
from jax.experimental.pallas import tpu as pltpu

_LANES = 128  # lane-dense output slab quantum


def _round_up(x, m):
    return ((x + m - 1) // m) * m


def _cdiv(a, b):
    return -(-a // b)


def _actor_critic_kernel(x_ref, w1_ref, b1_ref, w2_ref, b2_ref, w3_ref, b3_ref,
                         mask_ref, out_ref):
    mm_dtype = w1_ref.dtype  # bf16 fast path or f32 parity path

    # Fused layer 1: [TB, in] @ [in, 2H]  (actor lanes || critic lanes)
    x = x_ref[...].astype(mm_dtype)
    h = jnp.dot(x, w1_ref[...], preferred_element_type=jnp.float32) + b1_ref[...]
    h = jnp.maximum(h, 0.0)

    # Layer 2
    hc = h.astype(mm_dtype)
    if len(w2_ref.shape) == 3:
        # Split path (hidden >= 128, multiple of 128): two lane-aligned matmuls,
        # avoids the 2x wasted FLOPs of a block-diagonal [2H, 2H] weight.
        hsz = w2_ref.shape[1]
        ha = jnp.dot(hc[:, :hsz], w2_ref[0], preferred_element_type=jnp.float32)
        hv = jnp.dot(hc[:, hsz:], w2_ref[1], preferred_element_type=jnp.float32)
        h = jnp.concatenate([ha, hv], axis=1) + b2_ref[...]
    else:
        # Fused block-diagonal path: free while 2H <= one MXU tile (128).
        h = jnp.dot(hc, w2_ref[...], preferred_element_type=jnp.float32) + b2_ref[...]
    h = jnp.maximum(h, 0.0)

    # Fused layer 3: [TB, 2H] @ [2H, out_pad]  (actor cols | value col | zero pad)
    out = jnp.dot(h.astype(mm_dtype), w3_ref[...],
                  preferred_element_type=jnp.float32) + b3_ref[...]

    # Tanh only on actor columns; value column (and zero pad) untouched.
    # Resident mask input instead of a per-step broadcasted_iota + compare.
    m = jnp.broadcast_to(mask_ref[...], out.shape)
    out_ref[...] = jnp.where(m != 0.0, jnp.tanh(out), out)


def pack_params(params, *, matmul_dtype=jnp.bfloat16):
    """Fuse the 12 PyTorch-style (transposed) weights/biases into 3 matmuls."""
    input_dim, hidden = params["aw1"].shape
    output_dim = params["aw3"].shape[1]
    f32 = jnp.float32
    out_pad = _round_up(output_dim + 1, _LANES)  # generalizes past 128 outputs

    # Layer 1: shared input -> concatenate along output lanes.
    w1 = jnp.concatenate([params["aw1"], params["cw1"]], axis=1)          # [in, 2H]
    b1 = jnp.concatenate([params["ab1"], params["cb1"]], axis=1)          # [1, 2H]

    # Layer 2: block-diagonal while cheap; stacked (split) once hidden >= 128.
    split_l2 = (hidden >= 128) and (hidden % 128 == 0)
    if split_l2:
        w2 = jnp.stack([params["aw2"], params["cw2"]], axis=0)            # [2, H, H]
    else:
        zhh = jnp.zeros((hidden, hidden), f32)
        w2 = jnp.concatenate(
            [jnp.concatenate([params["aw2"], zhh], axis=1),
             jnp.concatenate([zhh, params["cw2"]], axis=1)], axis=0)      # [2H, 2H]
    b2 = jnp.concatenate([params["ab2"], params["cb2"]], axis=1)          # [1, 2H]

    # Layer 3: block arrangement -> [2H, output_dim + 1], padded to out_pad lanes.
    w3 = jnp.concatenate(
        [jnp.concatenate([params["aw3"], jnp.zeros((hidden, 1), f32)], axis=1),
         jnp.concatenate([jnp.zeros((hidden, output_dim), f32), params["cw3"]],
                         axis=1)], axis=0)                                # [2H, O+1]
    b3 = jnp.concatenate([params["ab3"], params["cb3"]], axis=1)          # [1, O+1]
    pad = out_pad - (output_dim + 1)
    w3 = jnp.pad(w3, ((0, 0), (0, pad)))
    b3 = jnp.pad(b3, ((0, 0), (0, pad)))

    # Resident tanh mask: 1.0 on actor columns, 0.0 on value + pad columns.
    mask = (jnp.arange(out_pad) < output_dim).astype(f32)[None, :]        # [1, out_pad]

    return {
        # matmul operands in matmul_dtype (bf16 default); biases/mask stay f32.
        "w1": w1.astype(matmul_dtype), "b1": b1,
        "w2": w2.astype(matmul_dtype), "b2": b2,
        "w3": w3.astype(matmul_dtype), "b3": b3,
        "mask": mask,
        "output_dim": output_dim, "input_dim": input_dim,
        "hidden": hidden, "out_pad": out_pad,
    }


def actor_critic_forward(state, packed, *, tb=None, tb_cap=2048):
    """state: [B, input_dim] f32; packed: output of pack_params()."""
    B, input_dim = state.shape
    output_dim = packed["output_dim"]
    out_pad = packed["out_pad"]

    if tb is None:
        # Adaptive batch tile: large enough to amortize the ~0.35us per-step
        # overhead (cap 2048 -> double-buffered f32 out tile is only ~2 MiB,
        # far under every generation's scoped VMEM, so no vmem_limit bump
        # needed), at least 2 grid steps when possible so v7x megacore shards,
        # sublane-aligned so batch padding is <= ~8 rows per step.
        n_steps = max(1, _cdiv(B, tb_cap))
        if B > 8:
            n_steps = max(n_steps, 2)
        tb = _round_up(_cdiv(B, n_steps), 8)

    grid_n = _cdiv(B, tb)
    b_pad = grid_n * tb
    if b_pad != B:
        state = jnp.pad(state, ((0, b_pad - B), (0, 0)))

    def resident(arr):
        # Weights/biases/mask stay in VMEM across all grid steps.
        nd = arr.ndim
        return pl.BlockSpec(arr.shape, lambda i, _nd=nd: (0,) * _nd)

    # Advisory cost estimate for XLA's scheduler.
    two_h = packed["w1"].shape[1]
    if packed["w2"].ndim == 3:
        l2_flops = 4 * b_pad * packed["w2"].shape[1] ** 2
    else:
        l2_flops = 2 * b_pad * two_h * two_h
    flops = 2 * b_pad * input_dim * two_h + l2_flops + 2 * b_pad * two_h * out_pad
    weight_bytes = sum(int(packed[k].size) * packed[k].dtype.itemsize
                       for k in ("w1", "b1", "w2", "b2", "w3", "b3", "mask"))
    bytes_accessed = b_pad * input_dim * 4 + weight_bytes + b_pad * out_pad * 4
    cost = pl.CostEstimate(flops=int(flops),
                           transcendentals=int(b_pad * output_dim),
                           bytes_accessed=int(bytes_accessed))

    out = pl.pallas_call(
        _actor_critic_kernel,
        out_shape=jax.ShapeDtypeStruct((b_pad, out_pad), jnp.float32),
        grid=(grid_n,),
        in_specs=[
            pl.BlockSpec((tb, input_dim), lambda i: (i, 0)),
            resident(packed["w1"]), resident(packed["b1"]),
            resident(packed["w2"]), resident(packed["b2"]),
            resident(packed["w3"]), resident(packed["b3"]),
            resident(packed["mask"]),
        ],
        out_specs=pl.BlockSpec((tb, out_pad), lambda i: (i, 0)),
        compiler_params=pltpu.CompilerParams(dimension_semantics=("parallel",)),
        cost_estimate=cost,
    )(state, packed["w1"], packed["b1"], packed["w2"], packed["b2"],
      packed["w3"], packed["b3"], packed["mask"])

    action_mean = out[:B, :output_dim]
    value = out[:B, output_dim:output_dim + 1]
    return action_mean, value


def xavier_uniform(key, fan_in, fan_out, gain):
    # Matches torch.nn.init.xavier_uniform_ bound (depends on fan_in + fan_out);
    # emitted directly as [in, out] (transposed vs torch's [out, in]).
    bound = gain * math.sqrt(6.0 / (fan_in + fan_out))
    return jax.random.uniform(
        key, (fan_in, fan_out), dtype=jnp.float32, minval=-bound, maxval=bound
    )


def init_params(key, input_dim, hidden_dim, output_dim):
    gain = 5.0
    keys = jax.random.split(key, 6)
    params = {
        # actor
        "aw1": xavier_uniform(keys[0], input_dim, hidden_dim, gain),
        "ab1": jnp.zeros((1, hidden_dim), jnp.float32),
        "aw2": xavier_uniform(keys[1], hidden_dim, hidden_dim, gain),
        "ab2": jnp.zeros((1, hidden_dim), jnp.float32),
        "aw3": xavier_uniform(keys[2], hidden_dim, output_dim, gain),
        "ab3": jnp.zeros((1, output_dim), jnp.float32),
        # critic
        "cw1": xavier_uniform(keys[3], input_dim, hidden_dim, gain),
        "cb1": jnp.zeros((1, hidden_dim), jnp.float32),
        "cw2": xavier_uniform(keys[4], hidden_dim, hidden_dim, gain),
        "cb2": jnp.zeros((1, hidden_dim), jnp.float32),
        "cw3": xavier_uniform(keys[5], hidden_dim, 1, gain),
        "cb3": jnp.zeros((1, 1), jnp.float32),
        # unused in forward(), kept for parity with the PyTorch module
        "log_std": jnp.ones((output_dim,), jnp.float32) * 2.0,
    }
    return params


def reference_forward(state, p):
    """Pure-JAX reference of the PyTorch forward for verification."""
    h = jnp.maximum(state @ p["aw1"] + p["ab1"], 0.0)
    h = jnp.maximum(h @ p["aw2"] + p["ab2"], 0.0)
    action = jnp.tanh(h @ p["aw3"] + p["ab3"])
    c = jnp.maximum(state @ p["cw1"] + p["cb1"], 0.0)
    c = jnp.maximum(c @ p["cw2"] + p["cb2"], 0.0)
    value = c @ p["cw3"] + p["cb3"]
    return action, value


if __name__ == "__main__":
    key = jax.random.PRNGKey(0)
    k_param, k_state, k_param2, k_state2 = jax.random.split(key, 4)

    # --- Config 1: small shapes, fused block-diagonal layer 2 ---------------
    batch, input_dim, hidden_dim, output_dim = 8, 16, 32, 8
    params = init_params(k_param, input_dim, hidden_dim, output_dim)
    state = jax.random.normal(k_state, (batch, input_dim), dtype=jnp.float32)
    ref_action, ref_value = reference_forward(state, params)

    # f32 parity path: exact agreement with the PyTorch-style reference.
    packed_f32 = pack_params(params, matmul_dtype=jnp.float32)
    am, v = actor_critic_forward(state, packed_f32)
    am = jax.block_until_ready(am)
    v = jax.block_until_ready(v)
    assert am.shape == (batch, output_dim)
    assert v.shape == (batch, 1)
    assert jnp.allclose(am, ref_action, atol=1e-5, rtol=1e-5)
    assert jnp.allclose(v, ref_value, atol=1e-4, rtol=1e-4)

    # bf16 fast path (default): MXU-efficient, loosened tolerances.
    packed_bf16 = pack_params(params)
    am_b, v_b = actor_critic_forward(state, packed_bf16)
    am_b = jax.block_until_ready(am_b)
    v_b = jax.block_until_ready(v_b)
    assert jnp.allclose(am_b, ref_action, atol=5e-2, rtol=5e-2)
    vscale = float(jnp.maximum(jnp.max(jnp.abs(ref_value)), 1.0))
    assert float(jnp.max(jnp.abs(v_b - ref_value))) < 5e-2 * vscale

    # --- Config 2: hidden >= 128 exercises split layer-2, multi-step grid ---
    batch2, input_dim2, hidden_dim2, output_dim2 = 300, 64, 128, 6
    params2 = init_params(k_param2, input_dim2, hidden_dim2, output_dim2)
    state2 = jax.random.normal(k_state2, (batch2, input_dim2), dtype=jnp.float32)
    ref_action2, ref_value2 = reference_forward(state2, params2)
    packed2 = pack_params(params2, matmul_dtype=jnp.float32)
    am2, v2 = actor_critic_forward(state2, packed2)
    am2 = jax.block_until_ready(am2)
    v2 = jax.block_until_ready(v2)
    assert am2.shape == (batch2, output_dim2)
    assert v2.shape == (batch2, 1)
    assert jnp.allclose(am2, ref_action2, atol=1e-3, rtol=1e-3)
    assert jnp.allclose(v2, ref_value2, atol=5e-2, rtol=5e-3)

    print("KERNEL_OK")
</pallas_src>

<mosaic_0001>
module attributes {stable_mosaic.version = 11 : i64} {
  func.func @_actor_critic_kernel(%arg0: i32, %arg1: memref<8x16xf32, #tpu.memory_space<vmem>>, %arg2: memref<16x64xf32, #tpu.memory_space<vmem>>, %arg3: memref<1x64xf32, #tpu.memory_space<vmem>>, %arg4: memref<64x64xf32, #tpu.memory_space<vmem>>, %arg5: memref<1x64xf32, #tpu.memory_space<vmem>>, %arg6: memref<64x128xf32, #tpu.memory_space<vmem>>, %arg7: memref<1x128xf32, #tpu.memory_space<vmem>>, %arg8: memref<1x128xf32, #tpu.memory_space<vmem>>, %arg9: memref<8x128xf32, #tpu.memory_space<vmem>>) attributes {dimension_semantics = [#tpu.dimension_semantics<parallel>], iteration_bounds = array<i64: 1>, scalar_prefetch = 0 : i64, scratch_operands = 0 : i64, tpu.core_type = #tpu.core_type<tc>, window_params = [{transform_indices = @transform_0, window_bounds = array<i64: 8, 16>}, {pipeline_mode = #tpu.pipeline_mode<synchronous>, transform_indices = @transform_1, window_bounds = array<i64: 16, 64>}, {pipeline_mode = #tpu.pipeline_mode<synchronous>, transform_indices = @transform_2, window_bounds = array<i64: 1, 64>}, {pipeline_mode = #tpu.pipeline_mode<synchronous>, transform_indices = @transform_3, window_bounds = array<i64: 64, 64>}, {pipeline_mode = #tpu.pipeline_mode<synchronous>, transform_indices = @transform_4, window_bounds = array<i64: 1, 64>}, {pipeline_mode = #tpu.pipeline_mode<synchronous>, transform_indices = @transform_5, window_bounds = array<i64: 64, 128>}, {pipeline_mode = #tpu.pipeline_mode<synchronous>, transform_indices = @transform_6, window_bounds = array<i64: 1, 128>}, {pipeline_mode = #tpu.pipeline_mode<synchronous>, transform_indices = @transform_7, window_bounds = array<i64: 1, 128>}, {transform_indices = @transform_8, window_bounds = array<i64: 8, 128>}]} {
    %c0 = arith.constant 0 : index
    %c0_0 = arith.constant 0 : index
    %0 = vector.load %arg1[%c0, %c0_0] : memref<8x16xf32, #tpu.memory_space<vmem>>, vector<8x16xf32>
    %c0_1 = arith.constant 0 : index
    %c0_2 = arith.constant 0 : index
    %1 = vector.load %arg2[%c0_1, %c0_2] : memref<16x64xf32, #tpu.memory_space<vmem>>, vector<16x64xf32>
    %cst = arith.constant dense<0.000000e+00> : vector<8x64xf32>
    %2 = tpu.matmul %0, %1, %cst {dimension_numbers = #tpu.dot_dimension_numbers<[1], [0], [0], [1], [0, 0, 1, 1], [], []>} : vector<8x16xf32>, vector<16x64xf32>, vector<8x64xf32> -> vector<8x64xf32>
    %c0_3 = arith.constant 0 : index
    %c0_4 = arith.constant 0 : index
    %3 = vector.load %arg3[%c0_3, %c0_4] : memref<1x64xf32, #tpu.memory_space<vmem>>, vector<1x64xf32>
    %4 = vector.broadcast %3 : vector<1x64xf32> to vector<8x64xf32>
    %5 = arith.addf %2, %4 : vector<8x64xf32>
    %cst_5 = arith.constant 0.000000e+00 : f32
    %6 = vector.broadcast %cst_5 : f32 to vector<8x64xf32>
    %7 = arith.maximumf %5, %6 : vector<8x64xf32>
    %c0_6 = arith.constant 0 : index
    %c0_7 = arith.constant 0 : index
    %8 = vector.load %arg4[%c0_6, %c0_7] : memref<64x64xf32, #tpu.memory_space<vmem>>, vector<64x64xf32>
    %cst_8 = arith.constant dense<0.000000e+00> : vector<8x64xf32>
    %9 = tpu.matmul %7, %8, %cst_8 {dimension_numbers = #tpu.dot_dimension_numbers<[1], [0], [0], [1], [0, 0, 1, 1], [], []>} : vector<8x64xf32>, vector<64x64xf32>, vector<8x64xf32> -> vector<8x64xf32>
    %c0_9 = arith.constant 0 : index
    %c0_10 = arith.constant 0 : index
    %10 = vector.load %arg5[%c0_9, %c0_10] : memref<1x64xf32, #tpu.memory_space<vmem>>, vector<1x64xf32>
    %11 = vector.broadcast %10 : vector<1x64xf32> to vector<8x64xf32>
    %12 = arith.addf %9, %11 : vector<8x64xf32>
    %cst_11 = arith.constant 0.000000e+00 : f32
    %13 = vector.broadcast %cst_11 : f32 to vector<8x64xf32>
    %14 = arith.maximumf %12, %13 : vector<8x64xf32>
    %c0_12 = arith.constant 0 : index
    %c0_13 = arith.constant 0 : index
    %15 = vector.load %arg6[%c0_12, %c0_13] : memref<64x128xf32, #tpu.memory_space<vmem>>, vector<64x128xf32>
    %cst_14 = arith.constant dense<0.000000e+00> : vector<8x128xf32>
    %16 = tpu.matmul %14, %15, %cst_14 {dimension_numbers = #tpu.dot_dimension_numbers<[1], [0], [0], [1], [0, 0, 1, 1], [], []>} : vector<8x64xf32>, vector<64x128xf32>, vector<8x128xf32> -> vector<8x128xf32>
    %c0_15 = arith.constant 0 : index
    %c0_16 = arith.constant 0 : index
    %17 = vector.load %arg7[%c0_15, %c0_16] : memref<1x128xf32, #tpu.memory_space<vmem>>, vector<1x128xf32>
    %18 = vector.broadcast %17 : vector<1x128xf32> to vector<8x128xf32>
    %19 = arith.addf %16, %18 : vector<8x128xf32>
    %c0_17 = arith.constant 0 : index
    %c0_18 = arith.constant 0 : index
    %20 = vector.load %arg8[%c0_17, %c0_18] : memref<1x128xf32, #tpu.memory_space<vmem>>, vector<1x128xf32>
    %21 = vector.shape_cast %20 : vector<1x128xf32> to vector<1x128xf32>
    %22 = vector.broadcast %21 : vector<1x128xf32> to vector<8x128xf32>
    %cst_19 = arith.constant 0.000000e+00 : f32
    %23 = vector.broadcast %cst_19 : f32 to vector<8x128xf32>
    %24 = arith.cmpf one, %22, %23 : vector<8x128xf32>
    %25 = math.tanh %19 : vector<8x128xf32>
    %26 = arith.select %24, %25, %19 : vector<8x128xi1>, vector<8x128xf32>
    %c0_20 = arith.constant 0 : index
    %c0_21 = arith.constant 0 : index
    %27 = vector.load %arg9[%c0_20, %c0_21] : memref<8x128xf32, #tpu.memory_space<vmem>>, vector<8x128xf32>
    tpu.vector_store %arg9[%c0_20, %c0_21], %26 {strides = array<i32>} : memref<8x128xf32, #tpu.memory_space<vmem>>, vector<8x128xf32>,
    return
  }
  func.func @transform_0(%arg0: i32) -> (i32, i32) {
    %c0_i32 = arith.constant 0 : i32
    %c0_i32_0 = arith.constant 0 : i32
    return %arg0, %c0_i32 : i32, i32
  }
  func.func @transform_1(%arg0: i32) -> (i32, i32) {
    %c0_i32 = arith.constant 0 : i32
    %c0_i32_0 = arith.constant 0 : i32
    %c0_i32_1 = arith.constant 0 : i32
    return %c0_i32, %c0_i32_0 : i32, i32
  }
  func.func @transform_2(%arg0: i32) -> (i32, i32) {
    %c0_i32 = arith.constant 0 : i32
    %c0_i32_0 = arith.constant 0 : i32
    %c0_i32_1 = arith.constant 0 : i32
    return %c0_i32, %c0_i32_0 : i32, i32
  }
  func.func @transform_3(%arg0: i32) -> (i32, i32) {
    %c0_i32 = arith.constant 0 : i32
    %c0_i32_0 = arith.constant 0 : i32
    %c0_i32_1 = arith.constant 0 : i32
    return %c0_i32, %c0_i32_0 : i32, i32
  }
  func.func @transform_4(%arg0: i32) -> (i32, i32) {
    %c0_i32 = arith.constant 0 : i32
    %c0_i32_0 = arith.constant 0 : i32
    %c0_i32_1 = arith.constant 0 : i32
    return %c0_i32, %c0_i32_0 : i32, i32
  }
  func.func @transform_5(%arg0: i32) -> (i32, i32) {
    %c0_i32 = arith.constant 0 : i32
    %c0_i32_0 = arith.constant 0 : i32
    %c0_i32_1 = arith.constant 0 : i32
    return %c0_i32, %c0_i32_0 : i32, i32
  }
  func.func @transform_6(%arg0: i32) -> (i32, i32) {
    %c0_i32 = arith.constant 0 : i32
    %c0_i32_0 = arith.constant 0 : i32
    %c0_i32_1 = arith.constant 0 : i32
    return %c0_i32, %c0_i32_0 : i32, i32
  }
  func.func @transform_7(%arg0: i32) -> (i32, i32) {
    %c0_i32 = arith.constant 0 : i32
    %c0_i32_0 = arith.constant 0 : i32
    %c0_i32_1 = arith.constant 0 : i32
    return %c0_i32, %c0_i32_0 : i32, i32
  }
  func.func @transform_8(%arg0: i32) -> (i32, i32) {
    %c0_i32 = arith.constant 0 : i32
    %c0_i32_0 = arith.constant 0 : i32
    return %arg0, %c0_i32 : i32, i32
  }
}

</mosaic_0001>

<llo_original>
// kernel: tpu_custom_call.1
$region0: #{tpu_custom_call.1}
  #allocation0 [shape = 'u32[]', space=smem, size = 0x4, offset = 0x4, fixed_abs, tag = 'smem constant byte address 0x4 - core index']
  #allocation1 [shape = 'u32[72,128]{1,0:T(1,128)}', space=vmem, size = 0x9000, scoped, tag = 'internal scratch']
  %s0 = inlined_call_operand.hbm [shape: f32[8,16], index: 0, kind: input, shape index: {}]
  %s1 = inlined_call_operand.hbm [shape: f32[16,64], index: 1, kind: input, shape index: {}]
  %s2 = inlined_call_operand.vmem [shape: f32[1,64], index: 2, kind: input, shape index: {}]
  %s3 = inlined_call_operand.hbm [shape: f32[64,64], index: 3, kind: input, shape index: {}]
  %s4 = inlined_call_operand.vmem [shape: f32[1,64], index: 4, kind: input, shape index: {}]
  %s5 = inlined_call_operand.hbm [shape: f32[64,128], index: 5, kind: input, shape index: {}]
  %s6 = inlined_call_operand.vmem [shape: f32[1,128], index: 6, kind: input, shape index: {}]
  %s7 = inlined_call_operand.vmem [shape: f32[1,128], index: 7, kind: input, shape index: {}]
  %s8 = inlined_call_operand.hbm [shape: f32[8,128], index: 8, kind: output, shape index: {}]
  %s9 = sld [smem:[#allocation0]]
  $region58: #{tpu_custom_call.1} parent=0
    _
  %s11 = ssub.s32 1, %s9
  %s12 = scalar_select 0, %s11, %s9
  $region1: #{tpu_custom_call.1} parent=0
    #allocation2 [shape = 'u8[4096]{0}', space=vmem, size = 0x1000, scoped, tag = 'input window, operand 0, single buffered']
    #allocation3 [shape = 's32[1]{0}', space=sflag, size = 0x4, scoped, tag = 'scoped memory for tpu_custom_call.1']
    #allocation4 [shape = 's32[1]{0}', space=sflag, size = 0x4, scoped, tag = 'scoped memory for tpu_custom_call.1']
    #allocation5 [shape = 'u8[8192]{0}', space=vmem, size = 0x2000, scoped, tag = 'input window, operand 1, single buffered']
    #allocation6 [shape = 's32[1]{0}', space=sflag, size = 0x4, scoped, tag = 'scoped memory for tpu_custom_call.1']
    #allocation7 [shape = 'u8[32768]{0}', space=vmem, size = 0x8000, scoped, tag = 'input window, operand 3, single buffered']
    #allocation8 [shape = 'u8[32768]{0}', space=vmem, size = 0x8000, scoped, tag = 'input window, operand 5, single buffered']
    #allocation9 [shape = 's32[1]{0}', space=sflag, size = 0x4, scoped, tag = 'scoped memory for tpu_custom_call.1']
    #allocation10 [shape = 'u8[4096]{0}', space=vmem, size = 0x1000, scoped, tag = 'output window, operand 0, single buffered']
    %13 = vsyncpa [#allocation3], 0
    %14 = vsyncpa [#allocation6], 0
    %15 = vsyncpa [#allocation9], 0
    %16 = vsyncpa [#allocation4], 0
    // Predicated region
    $region2: #{tpu_custom_call.1} parent=1 // pred_check
      _
    $region3: #{tpu_custom_call.1} parent=1 // pred_check_branch
      %18 = sbr.rel (0) target = $region5
    $region4: #{tpu_custom_call.1} parent=1 // pred_region
      %20 = vsyncadd [#allocation3], 0
      %s22 = sshll.u32 %s0, 4
      %s23 = int_to_ptr.hbm [resolvable:$true] %s22
      %s24 = sshll.u32 [#allocation2], 4
      %s25 = int_to_ptr.vmem [resolvable:$true] %s24
      %27 = dma.hbm_to_vmem [thread:$0]  %s23, 128, %s25, [#allocation3]
    $region5: #{tpu_custom_call.1} parent=1 // pred_fallthru
      _
    // Predicated region
    $region6: #{tpu_custom_call.1} parent=1 // pred_check
      _
    $region7: #{tpu_custom_call.1} parent=1 // pred_check_branch
      %29 = sbr.rel (0) target = $region9
    $region8: #{tpu_custom_call.1} parent=1 // pred_region
      %31 = vsyncadd [#allocation6], 0
      %s32 = sshll.u32 %s1, 4
      %s33 = int_to_ptr.hbm [resolvable:$true] %s32
      %s34 = sshll.u32 [#allocation5], 4
      %s35 = int_to_ptr.vmem [resolvable:$true] %s34
      %40 = dma.hbm_to_vmem [thread:$0]  %s33, 256, %s35, [#allocation6], 128, 128, 8
    $region9: #{tpu_custom_call.1} parent=1 // pred_fallthru
      _
    // Predicated region
    $region10: #{tpu_custom_call.1} parent=1 // pred_check
      _
    $region11: #{tpu_custom_call.1} parent=1 // pred_check_branch
      %42 = sbr.rel (0) target = $region13
    $region12: #{tpu_custom_call.1} parent=1 // pred_region
      _
    $region13: #{tpu_custom_call.1} parent=1 // pred_fallthru
      _
    // Predicated region
    $region14: #{tpu_custom_call.1} parent=1 // pred_check
      _
    $region15: #{tpu_custom_call.1} parent=1 // pred_check_branch
      %44 = sbr.rel (0) target = $region17
    $region16: #{tpu_custom_call.1} parent=1 // pred_region
      %46 = vsyncadd [#allocation6], 0
      %s47 = sshll.u32 %s3, 4
      %s48 = int_to_ptr.hbm [resolvable:$true] %s47
      %s49 = sshll.u32 [#allocation7], 4
      %s50 = int_to_ptr.vmem [resolvable:$true] %s49
      %55 = dma.hbm_to_vmem [thread:$0]  %s48, 1024, %s50, [#allocation6], 128, 128, 8
    $region17: #{tpu_custom_call.1} parent=1 // pred_fallthru
      _
    // Predicated region
    $region18: #{tpu_custom_call.1} parent=1 // pred_check
      _
    $region19: #{tpu_custom_call.1} parent=1 // pred_check_branch
      %57 = sbr.rel (0) target = $region21
    $region20: #{tpu_custom_call.1} parent=1 // pred_region
      _
    $region21: #{tpu_custom_call.1} parent=1 // pred_fallthru
      _
    // Predicated region
    $region22: #{tpu_custom_call.1} parent=1 // pred_check
      _
    $region23: #{tpu_custom_call.1} parent=1 // pred_check_branch
      %59 = sbr.rel (0) target = $region25
    $region24: #{tpu_custom_call.1} parent=1 // pred_region
      %61 = vsyncadd [#allocation9], 0
      %s62 = sshll.u32 %s5, 4
      %s63 = int_to_ptr.hbm [resolvable:$true] %s62
      %s64 = sshll.u32 [#allocation8], 4
      %s65 = int_to_ptr.vmem [resolvable:$true] %s64
      %70 = dma.hbm_to_vmem [thread:$0]  %s63, 1024, %s65, [#allocation9], 128, 128, 8
    $region25: #{tpu_custom_call.1} parent=1 // pred_fallthru
      _
    // Predicated region
    $region26: #{tpu_custom_call.1} parent=1 // pred_check
      _
    $region27: #{tpu_custom_call.1} parent=1 // pred_check_branch
      %72 = sbr.rel (0) target = $region29
    $region28: #{tpu_custom_call.1} parent=1 // pred_region
      _
    $region29: #{tpu_custom_call.1} parent=1 // pred_fallthru
      _
    // Predicated region
    $region30: #{tpu_custom_call.1} parent=1 // pred_check
      _
    $region31: #{tpu_custom_call.1} parent=1 // pred_check_branch
      %74 = sbr.rel (0) target = $region33
    $region32: #{tpu_custom_call.1} parent=1 // pred_region
      _
    $region33: #{tpu_custom_call.1} parent=1 // pred_fallthru
      _
    // Predicated region
    $region34: #{tpu_custom_call.1} parent=1 // pred_check
      _
    $region35: #{tpu_custom_call.1} parent=1 // pred_check_branch
      %76 = sbr.rel (0) target = $region37
    $region36: #{tpu_custom_call.1} parent=1 // pred_region
      %78 = dma.done [#allocation3], 128
    $region37: #{tpu_custom_call.1} parent=1 // pred_fallthru
      _
    // Predicated region
    $region38: #{tpu_custom_call.1} parent=1 // pred_check
      _
    $region39: #{tpu_custom_call.1} parent=1 // pred_check_branch
      %80 = sbr.rel (0) target = $region41
    $region40: #{tpu_custom_call.1} parent=1 // pred_region
      %82 = dma.done [#allocation6], 256
    $region41: #{tpu_custom_call.1} parent=1 // pred_fallthru
      _
    // Predicated region
    $region42: #{tpu_custom_call.1} parent=1 // pred_check
      _
    $region43: #{tpu_custom_call.1} parent=1 // pred_check_branch
      %84 = sbr.rel (0) target = $region45
    $region44: #{tpu_custom_call.1} parent=1 // pred_region
      %86 = dma.done [#allocation6], 1024
    $region45: #{tpu_custom_call.1} parent=1 // pred_fallthru
      _
    // Predicated region
    $region46: #{tpu_custom_call.1} parent=1 // pred_check
      _
    $region47: #{tpu_custom_call.1} parent=1 // pred_check_branch
      %88 = sbr.rel (0) target = $region49
    $region48: #{tpu_custom_call.1} parent=1 // pred_region
      %90 = dma.done [#allocation9], 1024
    $region49: #{tpu_custom_call.1} parent=1 // pred_fallthru
      _
    %v91 = vld [vmem:[#allocation2] sm:$0xff]
    %v92 = vld [vmem:[#allocation5] sm:$0xff]
    %v93 = vld [vmem:[#allocation5 + $0x8] sm:$0xff]
    %v94 = vld [vmem:[%s2] sm:$0x1]
    %v96 = vperm.slane %v94, 0
    %vm98 = vcmask 130048
    %v100 = vsel %vm98, %v91, 0
    %102 = vmatpush.msra.mxu0 0.0
    %103 = vmatpush.msra.mxu0 0.0
    %104 = vmatpush.msra.mxu0 0.0
    %105 = vmatpush.msra.mxu0 0.0
    %106 = vmatpush.msra.mxu0 0.0
    %107 = vmatpush.msra.mxu0 0.0
    %108 = vmatpush.msra.mxu0 0.0
    %109 = vmatpush.msra.mxu0 0.0
    %110 = vmatpush.msra.mxu0 0.0
    %111 = vmatpush.msra.mxu0 0.0
    %112 = vmatpush.msra.mxu0 0.0
    %113 = vmatpush.msra.mxu0 0.0
    %114 = vmatpush.msra.mxu0 0.0
    %115 = vmatpush.msra.mxu0 0.0
    %116 = vmatpush.msra.mxu0 %v93
    %117 = vmatpush.msra.mxu0 %v92
    %118 = vmatmul.f32.gmra.mxu0 %v100
    %v119 = vpop.f32.mrf.mxu0
    %v120 = vadd.f32 %v96, %v119
    %121 = vdwg.mxu0
    %v122 = vmax.f32 %v120, 0.0
    %v123 = vld [vmem:[#allocation7] sm:$0xff]
    %v124 = vld [vmem:[#allocation7 + $0x8] sm:$0xff]
    %v125 = vld [vmem:[#allocation7 + $0x10] sm:$0xff]
    %v126 = vld [vmem:[#allocation7 + $0x18] sm:$0xff]
    %v127 = vld [vmem:[#allocation7 + $0x20] sm:$0xff]
    %v128 = vld [vmem:[#allocation7 + $0x28] sm:$0xff]
    %v129 = vld [vmem:[#allocation7 + $0x30] sm:$0xff]
    %v130 = vld [vmem:[#allocation7 + $0x38] sm:$0xff]
    %v131 = vld [vmem:[%s4] sm:$0x1]
    %v133 = vperm.slane %v131, 0
    %vm135 = vcmask 523264
    %v137 = vsel %vm135, %v122, 0
    %139 = vmatpush.msra.mxu0 0.0
    %140 = vmatpush.msra.mxu0 0.0
    %141 = vmatpush.msra.mxu0 0.0
    %142 = vmatpush.msra.mxu0 0.0
    %143 = vmatpush.msra.mxu0 0.0
    %144 = vmatpush.msra.mxu0 0.0
    %145 = vmatpush.msra.mxu0 0.0
    %146 = vmatpush.msra.mxu0 0.0
    %147 = vmatpush.msra.mxu0 %v130
    %148 = vmatpush.msra.mxu0 %v129
    %149 = vmatpush.msra.mxu0 %v128
    %150 = vmatpush.msra.mxu0 %v127
    %151 = vmatpush.msra.mxu0 %v126
    %152 = vmatpush.msra.mxu0 %v125
    %153 = vmatpush.msra.mxu0 %v124
    %154 = vmatpush.msra.mxu0 %v123
    %155 = vmatmul.f32.gmra.mxu0 %v137
    %v156 = vpop.f32.mrf.mxu0
    %v157 = vadd.f32 %v133, %v156
    %158 = vdwg.mxu0
    %v159 = vmax.f32 %v157, 0.0
    %v160 = vld [vmem:[#allocation8] sm:$0xff]
    %v161 = vld [vmem:[#allocation8 + $0x8] sm:$0xff]
    %v162 = vld [vmem:[#allocation8 + $0x10] sm:$0xff]
    %v163 = vld [vmem:[#allocation8 + $0x18] sm:$0xff]
    %v164 = vld [vmem:[#allocation8 + $0x20] sm:$0xff]
    %v165 = vld [vmem:[#allocation8 + $0x28] sm:$0xff]
    %v166 = vld [vmem:[#allocation8 + $0x30] sm:$0xff]
    %v167 = vld [vmem:[#allocation8 + $0x38] sm:$0xff]
    %v168 = vld [vmem:[%s6] sm:$0x1]
    %v170 = vperm.slane %v168, 0
    %v173 = vsel %vm135, %v159, 0
    %175 = vmatpush.msra.mxu0 0.0
    %176 = vmatpush.msra.mxu0 0.0
    %177 = vmatpush.msra.mxu0 0.0
    %178 = vmatpush.msra.mxu0 0.0
    %179 = vmatpush.msra.mxu0 0.0
    %180 = vmatpush.msra.mxu0 0.0
    %181 = vmatpush.msra.mxu0 0.0
    %182 = vmatpush.msra.mxu0 0.0
    %183 = vmatpush.msra.mxu0 %v167
    %184 = vmatpush.msra.mxu0 %v166
    %185 = vmatpush.msra.mxu0 %v165
    %186 = vmatpush.msra.mxu0 %v164
    %187 = vmatpush.msra.mxu0 %v163
    %188 = vmatpush.msra.mxu0 %v162
    %189 = vmatpush.msra.mxu0 %v161
    %190 = vmatpush.msra.mxu0 %v160
    %191 = vmatmul.f32.gmra.mxu0 %v173
    %v192 = vpop.f32.mrf.mxu0
    %v193 = vadd.f32 %v170, %v192
    %194 = vdwg.mxu0
    %v195 = vld [vmem:[%s7] sm:$0x1]
    %v197 = vperm.slane %v195, 0
    %vm199 = vcmp.ne.f32.partialorder %v197, 0.0
    %v200 = vtanh.pop %v193
    %v201 = vsel %vm199, %v200, %v193
    %202 = vst [vmem:[#allocation10] sm:$0xff] %v201
    // Predicated region
    $region50: #{tpu_custom_call.1} parent=1 // pred_check
      _
    $region51: #{tpu_custom_call.1} parent=1 // pred_check_branch
      %204 = sbr.rel (0) target = $region53
    $region52: #{tpu_custom_call.1} parent=1 // pred_region
      %206 = vsyncadd [#allocation4], 0
      %s208 = sshll.u32 [#allocation10], 4
      %s209 = int_to_ptr.vmem [resolvable:$true] %s208
      %s210 = sshll.u32 %s8, 4
      %s211 = int_to_ptr.hbm [resolvable:$true] %s210
      %213 = dma.vmem_to_hbm [thread:$0]  %s209, 128, %s211, [#allocation4]
    $region53: #{tpu_custom_call.1} parent=1 // pred_fallthru
      _
    // Predicated region
    $region54: #{tpu_custom_call.1} parent=1 // pred_check
      _
    $region55: #{tpu_custom_call.1} parent=1 // pred_check_branch
      %215 = sbr.rel (0) target = $region57
    $region56: #{tpu_custom_call.1} parent=1 // pred_region
      %217 = dma.done [#allocation4], 128
    $region57: #{tpu_custom_call.1} parent=1 // pred_fallthru
      _
    %218 = vsyncpa [#allocation3], 1
    %219 = vsyncpa [#allocation6], 1
    %220 = vsyncpa [#allocation9], 1
    %221 = vsyncpa [#allocation4], 1

</llo_original>
